<compile_context>
chip_gen: v6e
topology: v6e:2x2x1
jax: 0.10.0
libtpu: 0.0.40
codegen_flags: <defaults>
</compile_context>

<pallas_src>
import numpy as np
import jax
import jax.numpy as jnp
from jax.experimental import pallas as pl
from jax.experimental.pallas import tpu as pltpu

_INV_LN10 = np.float32(1.0 / np.log(10.0))
_EPS = np.float32(1e-12)

# Tiling:
#  - Frequency: one block when F <= 512 (production F=257); otherwise tiles of
#    512 (multiple of 128 -> lane-dense output stores on interior blocks).
#  - Time: tiles of up to `max_time_tile` frames (default 1024; multiple of 8
#    sublanes on the output side, multiple of 128 lanes on the input side).
_F_SINGLE_BLOCK_MAX = 512
_TF_TILE = 512
_TT_DEFAULT = 1024


def _tile_sizes(f: int, t: int, max_time_tile: int):
    tf = f if f <= _F_SINGLE_BLOCK_MAX else _TF_TILE
    tt = t if t <= max_time_tile else max_time_tile
    return tf, tt


def _calc_feat_kernel(re_ref, im_ref, o_ref):
    """re_ref/im_ref: (tf, tt) float32 blocks of [F, T]; o_ref: (tt, tf) of [T, F]."""
    re = re_ref[...]
    im = im_ref[...]
    pow_spec = re * re + im * im                         # |Spec|^2
    feat = jnp.log(jnp.maximum(pow_spec, _EPS)) * _INV_LN10   # log10 via ln
    # Per-tile [F, T] -> [T, F]; output index_map is swapped accordingly.
    # (Only an output-sized tile goes through the XLU, hidden under the DMAs.)
    o_ref[...] = feat.T


def _reference(spec: jax.Array) -> jax.Array:
    pow_spec = jnp.abs(spec) ** 2
    feat = jnp.log10(jnp.maximum(pow_spec, 1e-12))
    return jnp.transpose(feat, (1, 0)).astype(jnp.float32)


def calc_feat(spec: jax.Array,
              *,
              max_time_tile: int = _TT_DEFAULT,
              time_axis_core_parallel: bool = False) -> jax.Array:
    """CalcFeat forward: complex64 [F, T] -> float32 [T, F].

    max_time_tile: 1024 (default) is safe under every generation's default
        scoped-VMEM limit; 2048 is recommended on v6e/v7x (vmem_limit_bytes is
        raised automatically when needed).
    time_axis_core_parallel: opt-in for multi-TensorCore chips (v7x): marks
        the leading time axis CORE_PARALLEL so the grid is split across cores.
    """
    assert spec.ndim == 2, "expected Spec of shape [F, T]"
    f, t = spec.shape

    # Real/imag extraction is one XLA pass; a TPU Pallas kernel cannot load
    # complex64 and XLA has no free complex->float reinterpret.
    re = jnp.real(spec).astype(jnp.float32)
    im = jnp.imag(spec).astype(jnp.float32)

    tf, tt = _tile_sizes(f, t, max_time_tile)
    grid = (pl.cdiv(t, tt), pl.cdiv(f, tf))          # time leading, freq second

    in_spec = pl.BlockSpec((tf, tt), lambda ti, fi: (fi, ti))
    out_spec = pl.BlockSpec((tt, tf), lambda ti, fi: (ti, fi))

    if time_axis_core_parallel:
        dims = (pltpu.CORE_PARALLEL, pltpu.PARALLEL)
    else:
        dims = ("parallel", "parallel")

    # Tiles above 1024 frames exceed the 16 MiB default scoped VMEM on v5e;
    # raise the limit only when actually needed (32 MiB fits every chip's
    # physical VMEM, including v7x's 64 MiB).
    vmem_limit = None if tt <= _TT_DEFAULT else 32 * 1024 * 1024

    return pl.pallas_call(
        _calc_feat_kernel,
        out_shape=jax.ShapeDtypeStruct((t, f), jnp.float32),
        grid=grid,
        in_specs=[in_spec, in_spec],
        out_specs=out_spec,
        compiler_params=pltpu.CompilerParams(
            dimension_semantics=dims,
            vmem_limit_bytes=vmem_limit),
        cost_estimate=pl.CostEstimate(
            flops=5 * f * t, transcendentals=f * t, bytes_accessed=12 * f * t),
    )(re, im)


if __name__ == "__main__":
    def _run_case(f, t):
        key = jax.random.PRNGKey(0)
        k_re, k_im = jax.random.split(key)
        spec_re = jax.random.normal(k_re, (f, t), dtype=jnp.float32)
        spec_im = jax.random.normal(k_im, (f, t), dtype=jnp.float32)
        spec = spec_re + 1j * spec_im                  # complex64 [F, T]

        out = calc_feat(spec)
        jax.block_until_ready(out)
        ref = _reference(spec)
        np.testing.assert_allclose(np.asarray(out), np.asarray(ref),
                                   rtol=1e-5, atol=1e-5)
        assert out.shape == (t, f), out.shape

    # Small single-tile case at the NSNet2 production bin count (F = 257).
    _run_case(257, 96)
    # Multi-tile case: exercises the time grid (tt = 1024), the masked
    # time-edge block, and the full-F 257-lane block.
    _run_case(257, 1999)

    print("KERNEL_OK")
</pallas_src>

<mosaic_0001>
module attributes {stable_mosaic.version = 11 : i64} {
  func.func @_calc_feat_kernel(%arg0: i32, %arg1: i32, %arg2: memref<257x96xf32, #tpu.memory_space<vmem>>, %arg3: memref<257x96xf32, #tpu.memory_space<vmem>>, %arg4: memref<96x257xf32, #tpu.memory_space<vmem>>) attributes {dimension_semantics = [#tpu.dimension_semantics<parallel>, #tpu.dimension_semantics<parallel>], iteration_bounds = array<i64: 1, 1>, scalar_prefetch = 0 : i64, scratch_operands = 0 : i64, tpu.core_type = #tpu.core_type<tc>, window_params = [{transform_indices = @transform_0, window_bounds = array<i64: 257, 96>}, {transform_indices = @transform_1, window_bounds = array<i64: 257, 96>}, {transform_indices = @transform_2, window_bounds = array<i64: 96, 257>}]} {
    %c0 = arith.constant 0 : index
    %c0_0 = arith.constant 0 : index
    %0 = vector.load %arg2[%c0, %c0_0] : memref<257x96xf32, #tpu.memory_space<vmem>>, vector<257x96xf32>
    %c0_1 = arith.constant 0 : index
    %c0_2 = arith.constant 0 : index
    %1 = vector.load %arg3[%c0_1, %c0_2] : memref<257x96xf32, #tpu.memory_space<vmem>>, vector<257x96xf32>
    %2 = arith.mulf %0, %0 : vector<257x96xf32>
    %3 = arith.mulf %1, %1 : vector<257x96xf32>
    %4 = arith.addf %2, %3 : vector<257x96xf32>
    %cst = arith.constant 9.99999996E-13 : f32
    %5 = vector.broadcast %cst : f32 to vector<257x96xf32>
    %6 = arith.maximumf %4, %5 : vector<257x96xf32>
    %7 = math.log %6 : vector<257x96xf32>
    %cst_3 = arith.constant 0.434294492 : f32
    %8 = vector.broadcast %cst_3 : f32 to vector<257x96xf32>
    %9 = arith.mulf %7, %8 : vector<257x96xf32>
    %10 = tpu.transpose %9, [1, 0] : vector<257x96xf32> -> vector<96x257xf32>
    %c0_4 = arith.constant 0 : index
    %c0_5 = arith.constant 0 : index
    %11 = vector.load %arg4[%c0_4, %c0_5] : memref<96x257xf32, #tpu.memory_space<vmem>>, vector<96x257xf32>
    tpu.vector_store %arg4[%c0_4, %c0_5], %10 {strides = array<i32>} : memref<96x257xf32, #tpu.memory_space<vmem>>, vector<96x257xf32>,
    return
  }
  func.func @transform_0(%arg0: i32, %arg1: i32) -> (i32, i32) {
    %c0_i32 = arith.constant 0 : i32
    return %arg1, %arg0 : i32, i32
  }
  func.func @transform_1(%arg0: i32, %arg1: i32) -> (i32, i32) {
    %c0_i32 = arith.constant 0 : i32
    return %arg1, %arg0 : i32, i32
  }
  func.func @transform_2(%arg0: i32, %arg1: i32) -> (i32, i32) {
    %c0_i32 = arith.constant 0 : i32
    return %arg0, %arg1 : i32, i32
  }
}

</mosaic_0001>

<llo_original>
// kernel: tpu_custom_call.1
$region0: #{tpu_custom_call.1}
  #allocation0 [shape = 'u32[]', space=smem, size = 0x4, offset = 0x4, fixed_abs, tag = 'smem constant byte address 0x4 - core index']
  #allocation1 [shape = 'u32[144,128]{1,0:T(1,128)}', space=vmem, size = 0x12000, scoped, tag = 'internal scratch']
  %s0 = inlined_call_operand.hbm [shape: f32[257,96], index: 0, kind: input, shape index: {}]
  %s1 = inlined_call_operand.hbm [shape: f32[257,96], index: 1, kind: input, shape index: {}]
  %s2 = inlined_call_operand.vmem [shape: f32[96,257], index: 2, kind: output, shape index: {}]
  %s3 = sld [smem:[#allocation0]]
  $region26: #{tpu_custom_call.1} parent=0
    _
  %s5 = ssub.s32 1, %s3
  %s6 = scalar_select 0, %s5, %s3
  $region1: #{tpu_custom_call.1} parent=0
    #allocation2 [shape = 'u8[135168]{0}', space=vmem, size = 0x21000, scoped, tag = 'input window, operand 0, single buffered']
    #allocation3 [shape = 's32[1]{0}', space=sflag, size = 0x4, scoped, tag = 'scoped memory for tpu_custom_call.1']
    #allocation4 [shape = 'u8[135168]{0}', space=vmem, size = 0x21000, scoped, tag = 'input window, operand 1, single buffered']
    #allocation5 [shape = 's32[1]{0}', space=sflag, size = 0x4, scoped, tag = 'scoped memory for tpu_custom_call.1']
    %7 = vsyncpa [#allocation3], 0
    %8 = vsyncpa [#allocation5], 0
    // Predicated region
    $region2: #{tpu_custom_call.1} parent=1 // pred_check
      _
    $region3: #{tpu_custom_call.1} parent=1 // pred_check_branch
      %10 = sbr.rel (0) target = $region5
    $region4: #{tpu_custom_call.1} parent=1 // pred_region
      %s12 = ssub.s32 4224, 4224
      %13 = vsyncadd [#allocation3], %s12
      %s14 = sshll.u32 [#allocation2], 4
      %s15 = int_to_ptr.vmem [resolvable:$true] %s14
      %20 = dma.hbm_to_vmem [thread:$0]  %s0, 4224, %s15, [#allocation3], 128, 128, 8
    $region5: #{tpu_custom_call.1} parent=1 // pred_fallthru
      _
    // Predicated region
    $region6: #{tpu_custom_call.1} parent=1 // pred_check
      _
    $region7: #{tpu_custom_call.1} parent=1 // pred_check_branch
      %22 = sbr.rel (0) target = $region9
    $region8: #{tpu_custom_call.1} parent=1 // pred_region
      %s24 = ssub.s32 4224, 4224
      %25 = vsyncadd [#allocation5], %s24
      %s26 = sshll.u32 [#allocation4], 4
      %s27 = int_to_ptr.vmem [resolvable:$true] %s26
      %32 = dma.hbm_to_vmem [thread:$0]  %s1, 4224, %s27, [#allocation5], 128, 128, 8
    $region9: #{tpu_custom_call.1} parent=1 // pred_fallthru
      _
    // Predicated region
    $region10: #{tpu_custom_call.1} parent=1 // pred_check
      _
    $region11: #{tpu_custom_call.1} parent=1 // pred_check_branch
      %34 = sbr.rel (0) target = $region13
    $region12: #{tpu_custom_call.1} parent=1 // pred_region
      %35 = dma.done [#allocation3], 4224
    $region13: #{tpu_custom_call.1} parent=1 // pred_fallthru
      _
    // Predicated region
    $region14: #{tpu_custom_call.1} parent=1 // pred_check
      _
    $region15: #{tpu_custom_call.1} parent=1 // pred_check_branch
      %37 = sbr.rel (0) target = $region17
    $region16: #{tpu_custom_call.1} parent=1 // pred_region
      %38 = dma.done [#allocation5], 4224
    $region17: #{tpu_custom_call.1} parent=1 // pred_fallthru
      _
    %v39 = vld [vmem:[#allocation2] sm:$0xff]
    %v40 = vld [vmem:[#allocation2 + $0x8] sm:$0xff]
    %v41 = vld [vmem:[#allocation2 + $0x10] sm:$0xff]
    %v42 = vld [vmem:[#allocation2 + $0x18] sm:$0xff]
    %v43 = vld [vmem:[#allocation2 + $0x20] sm:$0xff]
    %v44 = vld [vmem:[#allocation2 + $0x28] sm:$0xff]
    %v45 = vld [vmem:[#allocation2 + $0x30] sm:$0xff]
    %v46 = vld [vmem:[#allocation2 + $0x38] sm:$0xff]
    %v47 = vld [vmem:[#allocation2 + $0x40] sm:$0xff]
    %v48 = vld [vmem:[#allocation2 + $0x48] sm:$0xff]
    %v49 = vld [vmem:[#allocation2 + $0x50] sm:$0xff]
    %v50 = vld [vmem:[#allocation2 + $0x58] sm:$0xff]
    %v51 = vld [vmem:[#allocation2 + $0x60] sm:$0xff]
    %v52 = vld [vmem:[#allocation2 + $0x68] sm:$0xff]
    %v53 = vld [vmem:[#allocation2 + $0x70] sm:$0xff]
    %v54 = vld [vmem:[#allocation2 + $0x78] sm:$0xff]
    %v55 = vld [vmem:[#allocation2 + $0x80] sm:$0xff]
    %v56 = vld [vmem:[#allocation2 + $0x88] sm:$0xff]
    %v57 = vld [vmem:[#allocation2 + $0x90] sm:$0xff]
    %v58 = vld [vmem:[#allocation2 + $0x98] sm:$0xff]
    %v59 = vld [vmem:[#allocation2 + $0xa0] sm:$0xff]
    %v60 = vld [vmem:[#allocation2 + $0xa8] sm:$0xff]
    %v61 = vld [vmem:[#allocation2 + $0xb0] sm:$0xff]
    %v62 = vld [vmem:[#allocation2 + $0xb8] sm:$0xff]
    %v63 = vld [vmem:[#allocation2 + $0xc0] sm:$0xff]
    %v64 = vld [vmem:[#allocation2 + $0xc8] sm:$0xff]
    %v65 = vld [vmem:[#allocation2 + $0xd0] sm:$0xff]
    %v66 = vld [vmem:[#allocation2 + $0xd8] sm:$0xff]
    %v67 = vld [vmem:[#allocation2 + $0xe0] sm:$0xff]
    %v68 = vld [vmem:[#allocation2 + $0xe8] sm:$0xff]
    %v69 = vld [vmem:[#allocation2 + $0xf0] sm:$0xff]
    %v70 = vld [vmem:[#allocation2 + $0xf8] sm:$0xff]
    %v71 = vld [vmem:[#allocation2 + $0x100] sm:$0x1]
    %v72 = vld [vmem:[#allocation4] sm:$0xff]
    %v73 = vld [vmem:[#allocation4 + $0x8] sm:$0xff]
    %v74 = vld [vmem:[#allocation4 + $0x10] sm:$0xff]
    %v75 = vld [vmem:[#allocation4 + $0x18] sm:$0xff]
    %v76 = vld [vmem:[#allocation4 + $0x20] sm:$0xff]
    %v77 = vld [vmem:[#allocation4 + $0x28] sm:$0xff]
    %v78 = vld [vmem:[#allocation4 + $0x30] sm:$0xff]
    %v79 = vld [vmem:[#allocation4 + $0x38] sm:$0xff]
    %v80 = vld [vmem:[#allocation4 + $0x40] sm:$0xff]
    %v81 = vld [vmem:[#allocation4 + $0x48] sm:$0xff]
    %v82 = vld [vmem:[#allocation4 + $0x50] sm:$0xff]
    %v83 = vld [vmem:[#allocation4 + $0x58] sm:$0xff]
    %v84 = vld [vmem:[#allocation4 + $0x60] sm:$0xff]
    %v85 = vld [vmem:[#allocation4 + $0x68] sm:$0xff]
    %v86 = vld [vmem:[#allocation4 + $0x70] sm:$0xff]
    %v87 = vld [vmem:[#allocation4 + $0x78] sm:$0xff]
    %v88 = vld [vmem:[#allocation4 + $0x80] sm:$0xff]
    %v89 = vld [vmem:[#allocation4 + $0x88] sm:$0xff]
    %v90 = vld [vmem:[#allocation4 + $0x90] sm:$0xff]
    %v91 = vld [vmem:[#allocation4 + $0x98] sm:$0xff]
    %v92 = vld [vmem:[#allocation4 + $0xa0] sm:$0xff]
    %v93 = vld [vmem:[#allocation4 + $0xa8] sm:$0xff]
    %v94 = vld [vmem:[#allocation4 + $0xb0] sm:$0xff]
    %v95 = vld [vmem:[#allocation4 + $0xb8] sm:$0xff]
    %v96 = vld [vmem:[#allocation4 + $0xc0] sm:$0xff]
    %v97 = vld [vmem:[#allocation4 + $0xc8] sm:$0xff]
    %v98 = vld [vmem:[#allocation4 + $0xd0] sm:$0xff]
    %v99 = vld [vmem:[#allocation4 + $0xd8] sm:$0xff]
    %v100 = vld [vmem:[#allocation4 + $0xe0] sm:$0xff]
    %v101 = vld [vmem:[#allocation4 + $0xe8] sm:$0xff]
    %v102 = vld [vmem:[#allocation4 + $0xf0] sm:$0xff]
    %v103 = vld [vmem:[#allocation4 + $0xf8] sm:$0xff]
    %v104 = vld [vmem:[#allocation4 + $0x100] sm:$0x1]
    %v105 = vmul.f32 %v39, %v39
    %v106 = vmul.f32 %v40, %v40
    %v107 = vmul.f32 %v41, %v41
    %v108 = vmul.f32 %v42, %v42
    %v109 = vmul.f32 %v43, %v43
    %v110 = vmul.f32 %v44, %v44
    %v111 = vmul.f32 %v45, %v45
    %v112 = vmul.f32 %v46, %v46
    %v113 = vmul.f32 %v47, %v47
    %v114 = vmul.f32 %v48, %v48
    %v115 = vmul.f32 %v49, %v49
    %v116 = vmul.f32 %v50, %v50
    %v117 = vmul.f32 %v51, %v51
    %v118 = vmul.f32 %v52, %v52
    %v119 = vmul.f32 %v53, %v53
    %v120 = vmul.f32 %v54, %v54
    %v121 = vmul.f32 %v55, %v55
    %v122 = vmul.f32 %v56, %v56
    %v123 = vmul.f32 %v57, %v57
    %v124 = vmul.f32 %v58, %v58
    %v125 = vmul.f32 %v59, %v59
    %v126 = vmul.f32 %v60, %v60
    %v127 = vmul.f32 %v61, %v61
    %v128 = vmul.f32 %v62, %v62
    %v129 = vmul.f32 %v63, %v63
    %v130 = vmul.f32 %v64, %v64
    %v131 = vmul.f32 %v65, %v65
    %v132 = vmul.f32 %v66, %v66
    %v133 = vmul.f32 %v67, %v67
    %v134 = vmul.f32 %v68, %v68
    %v135 = vmul.f32 %v69, %v69
    %v136 = vmul.f32 %v70, %v70
    %v137 = vmul.f32 %v71, %v71
    %v138 = vmul.f32 %v72, %v72
    %v139 = vmul.f32 %v73, %v73
    %v140 = vmul.f32 %v74, %v74
    %v141 = vmul.f32 %v75, %v75
    %v142 = vmul.f32 %v76, %v76
    %v143 = vmul.f32 %v77, %v77
    %v144 = vmul.f32 %v78, %v78
    %v145 = vmul.f32 %v79, %v79
    %v146 = vmul.f32 %v80, %v80
    %v147 = vmul.f32 %v81, %v81
    %v148 = vmul.f32 %v82, %v82
    %v149 = vmul.f32 %v83, %v83
    %v150 = vmul.f32 %v84, %v84
    %v151 = vmul.f32 %v85, %v85
    %v152 = vmul.f32 %v86, %v86
    %v153 = vmul.f32 %v87, %v87
    %v154 = vmul.f32 %v88, %v88
    %v155 = vmul.f32 %v89, %v89
    %v156 = vmul.f32 %v90, %v90
    %v157 = vmul.f32 %v91, %v91
    %v158 = vmul.f32 %v92, %v92
    %v159 = vmul.f32 %v93, %v93
    %v160 = vmul.f32 %v94, %v94
    %v161 = vmul.f32 %v95, %v95
    %v162 = vmul.f32 %v96, %v96
    %v163 = vmul.f32 %v97, %v97
    %v164 = vmul.f32 %v98, %v98
    %v165 = vmul.f32 %v99, %v99
    %v166 = vmul.f32 %v100, %v100
    %v167 = vmul.f32 %v101, %v101
    %v168 = vmul.f32 %v102, %v102
    %v169 = vmul.f32 %v103, %v103
    %v170 = vmul.f32 %v104, %v104
    %v171 = vadd.f32 %v105, %v138
    %v172 = vadd.f32 %v106, %v139
    %v173 = vadd.f32 %v107, %v140
    %v174 = vadd.f32 %v108, %v141
    %v175 = vadd.f32 %v109, %v142
    %v176 = vadd.f32 %v110, %v143
    %v177 = vadd.f32 %v111, %v144
    %v178 = vadd.f32 %v112, %v145
    %v179 = vadd.f32 %v113, %v146
    %v180 = vadd.f32 %v114, %v147
    %v181 = vadd.f32 %v115, %v148
    %v182 = vadd.f32 %v116, %v149
    %v183 = vadd.f32 %v117, %v150
    %v184 = vadd.f32 %v118, %v151
    %v185 = vadd.f32 %v119, %v152
    %v186 = vadd.f32 %v120, %v153
    %v187 = vadd.f32 %v121, %v154
    %v188 = vadd.f32 %v122, %v155
    %v189 = vadd.f32 %v123, %v156
    %v190 = vadd.f32 %v124, %v157
    %v191 = vadd.f32 %v125, %v158
    %v192 = vadd.f32 %v126, %v159
    %v193 = vadd.f32 %v127, %v160
    %v194 = vadd.f32 %v128, %v161
    %v195 = vadd.f32 %v129, %v162
    %v196 = vadd.f32 %v130, %v163
    %v197 = vadd.f32 %v131, %v164
    %v198 = vadd.f32 %v132, %v165
    %v199 = vadd.f32 %v133, %v166
    %v200 = vadd.f32 %v134, %v167
    %v201 = vadd.f32 %v135, %v168
    %v202 = vadd.f32 %v136, %v169
    %v203 = vadd.f32 %v137, %v170
    %v204 = vmax.f32 %v171, 1e-12
    %v205 = vmax.f32 %v172, 1e-12
    %v206 = vmax.f32 %v173, 1e-12
    %v207 = vmax.f32 %v174, 1e-12
    %v208 = vmax.f32 %v175, 1e-12
    %v209 = vmax.f32 %v176, 1e-12
    %v210 = vmax.f32 %v177, 1e-12
    %v211 = vmax.f32 %v178, 1e-12
    %v212 = vmax.f32 %v179, 1e-12
    %v213 = vmax.f32 %v180, 1e-12
    %v214 = vmax.f32 %v181, 1e-12
    %v215 = vmax.f32 %v182, 1e-12
    %v216 = vmax.f32 %v183, 1e-12
    %v217 = vmax.f32 %v184, 1e-12
    %v218 = vmax.f32 %v185, 1e-12
    %v219 = vmax.f32 %v186, 1e-12
    %v220 = vmax.f32 %v187, 1e-12
    %v221 = vmax.f32 %v188, 1e-12
    %v222 = vmax.f32 %v189, 1e-12
    %v223 = vmax.f32 %v190, 1e-12
    %v224 = vmax.f32 %v191, 1e-12
    %v225 = vmax.f32 %v192, 1e-12
    %v226 = vmax.f32 %v193, 1e-12
    %v227 = vmax.f32 %v194, 1e-12
    %v228 = vmax.f32 %v195, 1e-12
    %v229 = vmax.f32 %v196, 1e-12
    %v230 = vmax.f32 %v197, 1e-12
    %v231 = vmax.f32 %v198, 1e-12
    %v232 = vmax.f32 %v199, 1e-12
    %v233 = vmax.f32 %v200, 1e-12
    %v234 = vmax.f32 %v201, 1e-12
    %v235 = vmax.f32 %v202, 1e-12
    %v236 = vmax.f32 %v203, 1e-12
    %v237 = vlog2.pop %v204
    %v238 = vmul.f32 %v237, 0.6931472
    %v239 = vlog2.pop %v205
    %v240 = vmul.f32 %v239, 0.6931472
    %v241 = vlog2.pop %v206
    %v242 = vmul.f32 %v241, 0.6931472
    %v243 = vlog2.pop %v207
    %v244 = vmul.f32 %v243, 0.6931472
    %v245 = vlog2.pop %v208
    %v246 = vmul.f32 %v245, 0.6931472
    %v247 = vlog2.pop %v209
    %v248 = vmul.f32 %v247, 0.6931472
    %v249 = vlog2.pop %v210
    %v250 = vmul.f32 %v249, 0.6931472
    %v251 = vlog2.pop %v211
    %v252 = vmul.f32 %v251, 0.6931472
    %v253 = vlog2.pop %v212
    %v254 = vmul.f32 %v253, 0.6931472
    %v255 = vlog2.pop %v213
    %v256 = vmul.f32 %v255, 0.6931472
    %v257 = vlog2.pop %v214
    %v258 = vmul.f32 %v257, 0.6931472
    %v259 = vlog2.pop %v215
    %v260 = vmul.f32 %v259, 0.6931472
    %v261 = vlog2.pop %v216
    %v262 = vmul.f32 %v261, 0.6931472
    %v263 = vlog2.pop %v217
    %v264 = vmul.f32 %v263, 0.6931472
    %v265 = vlog2.pop %v218
    %v266 = vmul.f32 %v265, 0.6931472
    %v267 = vlog2.pop %v219
    %v268 = vmul.f32 %v267, 0.6931472
    %v269 = vlog2.pop %v220
    %v270 = vmul.f32 %v269, 0.6931472
    %v271 = vlog2.pop %v221
    %v272 = vmul.f32 %v271, 0.6931472
    %v273 = vlog2.pop %v222
    %v274 = vmul.f32 %v273, 0.6931472
    %v275 = vlog2.pop %v223
    %v276 = vmul.f32 %v275, 0.6931472
    %v277 = vlog2.pop %v224
    %v278 = vmul.f32 %v277, 0.6931472
    %v279 = vlog2.pop %v225
    %v280 = vmul.f32 %v279, 0.6931472
    %v281 = vlog2.pop %v226
    %v282 = vmul.f32 %v281, 0.6931472
    %v283 = vlog2.pop %v227
    %v284 = vmul.f32 %v283, 0.6931472
    %v285 = vlog2.pop %v228
    %v286 = vmul.f32 %v285, 0.6931472
    %v287 = vlog2.pop %v229
    %v288 = vmul.f32 %v287, 0.6931472
    %v289 = vlog2.pop %v230
    %v290 = vmul.f32 %v289, 0.6931472
    %v291 = vlog2.pop %v231
    %v292 = vmul.f32 %v291, 0.6931472
    %v293 = vlog2.pop %v232
    %v294 = vmul.f32 %v293, 0.6931472
    %v295 = vlog2.pop %v233
    %v296 = vmul.f32 %v295, 0.6931472
    %v297 = vlog2.pop %v234
    %v298 = vmul.f32 %v297, 0.6931472
    %v299 = vlog2.pop %v235
    %v300 = vmul.f32 %v299, 0.6931472
    %v301 = vlog2.pop %v236
    %v302 = vmul.f32 %v301, 0.6931472
    %v303 = vmul.f32 %v238, 0.4342945
    %v304 = vmul.f32 %v240, 0.4342945
    %v305 = vmul.f32 %v242, 0.4342945
    %v306 = vmul.f32 %v244, 0.4342945
    %v307 = vmul.f32 %v246, 0.4342945
    %v308 = vmul.f32 %v248, 0.4342945
    %v309 = vmul.f32 %v250, 0.4342945
    %v310 = vmul.f32 %v252, 0.4342945
    %v311 = vmul.f32 %v254, 0.4342945
    %v312 = vmul.f32 %v256, 0.4342945
    %v313 = vmul.f32 %v258, 0.4342945
    %v314 = vmul.f32 %v260, 0.4342945
    %v315 = vmul.f32 %v262, 0.4342945
    %v316 = vmul.f32 %v264, 0.4342945
    %v317 = vmul.f32 %v266, 0.4342945
    %v318 = vmul.f32 %v268, 0.4342945
    %v319 = vmul.f32 %v270, 0.4342945
    %v320 = vmul.f32 %v272, 0.4342945
    %v321 = vmul.f32 %v274, 0.4342945
    %v322 = vmul.f32 %v276, 0.4342945
    %v323 = vmul.f32 %v278, 0.4342945
    %v324 = vmul.f32 %v280, 0.4342945
    %v325 = vmul.f32 %v282, 0.4342945
    %v326 = vmul.f32 %v284, 0.4342945
    %v327 = vmul.f32 %v286, 0.4342945
    %v328 = vmul.f32 %v288, 0.4342945
    %v329 = vmul.f32 %v290, 0.4342945
    %v330 = vmul.f32 %v292, 0.4342945
    %v331 = vmul.f32 %v294, 0.4342945
    %v332 = vmul.f32 %v296, 0.4342945
    %v333 = vmul.f32 %v298, 0.4342945
    %v334 = vmul.f32 %v300, 0.4342945
    %v335 = vmul.f32 %v302, 0.4342945
    %336 = vxpose.xlu0.b32.start [1/16] %v303, 128
    %337 = vxpose.xlu0.b32.cont [2/16] %v304, 128
    %338 = vxpose.xlu0.b32.cont [3/16] %v305, 128
    %339 = vxpose.xlu0.b32.cont [4/16] %v306, 128
    %340 = vxpose.xlu0.b32.cont [5/16] %v307, 128
    %341 = vxpose.xlu0.b32.cont [6/16] %v308, 128
    %342 = vxpose.xlu0.b32.cont [7/16] %v309, 128
    %343 = vxpose.xlu0.b32.cont [8/16] %v310, 128
    %344 = vxpose.xlu0.b32.cont [9/16] %v311, 128
    %345 = vxpose.xlu0.b32.cont [10/16] %v312, 128
    %346 = vxpose.xlu0.b32.cont [11/16] %v313, 128
    %347 = vxpose.xlu0.b32.cont [12/16] %v314, 128
    %348 = vxpose.xlu0.b32.cont [13/16] %v315, 128
    %349 = vxpose.xlu0.b32.cont [14/16] %v316, 128
    %350 = vxpose.xlu0.b32.cont [15/16] %v317, 128
    %351 = vxpose.xlu0.b32.end [16/16] %v318, 128
    %v352 = vpop.trf.xlu0
    %v353 = vpop.trf.xlu0
    %v354 = vpop.trf.xlu0
    %v355 = vpop.trf.xlu0
    %v356 = vpop.trf.xlu0
    %v357 = vpop.trf.xlu0
    %v358 = vpop.trf.xlu0
    %v359 = vpop.trf.xlu0
    %v360 = vpop.trf.xlu0
    %v361 = vpop.trf.xlu0
    %v362 = vpop.trf.xlu0
    %v363 = vpop.trf.xlu0
    %v364 = vpop.trf.xlu0
    %v365 = vpop.trf.xlu0
    %v366 = vpop.trf.xlu0
    %v367 = vpop.trf.xlu0
    %368 = vxpose.xlu0.b32.start [1/16] %v319, 128
    %369 = vxpose.xlu0.b32.cont [2/16] %v320, 128
    %370 = vxpose.xlu0.b32.cont [3/16] %v321, 128
    %371 = vxpose.xlu0.b32.cont [4/16] %v322, 128
    %372 = vxpose.xlu0.b32.cont [5/16] %v323, 128
    %373 = vxpose.xlu0.b32.cont [6/16] %v324, 128
    %374 = vxpose.xlu0.b32.cont [7/16] %v325, 128
    %375 = vxpose.xlu0.b32.cont [8/16] %v326, 128
    %376 = vxpose.xlu0.b32.cont [9/16] %v327, 128
    %377 = vxpose.xlu0.b32.cont [10/16] %v328, 128
    %378 = vxpose.xlu0.b32.cont [11/16] %v329, 128
    %379 = vxpose.xlu0.b32.cont [12/16] %v330, 128
    %380 = vxpose.xlu0.b32.cont [13/16] %v331, 128
    %381 = vxpose.xlu0.b32.cont [14/16] %v332, 128
    %382 = vxpose.xlu0.b32.cont [15/16] %v333, 128
    %383 = vxpose.xlu0.b32.end [16/16] %v334, 128
    %v384 = vpop.trf.xlu0
    %v385 = vpop.trf.xlu0
    %v386 = vpop.trf.xlu0
    %v387 = vpop.trf.xlu0
    %v388 = vpop.trf.xlu0
    %v389 = vpop.trf.xlu0
    %v390 = vpop.trf.xlu0
    %v391 = vpop.trf.xlu0
    %v392 = vpop.trf.xlu0
    %v393 = vpop.trf.xlu0
    %v394 = vpop.trf.xlu0
    %v395 = vpop.trf.xlu0
    %v396 = vpop.trf.xlu0
    %v397 = vpop.trf.xlu0
    %v398 = vpop.trf.xlu0
    %v399 = vpop.trf.xlu0
    %400 = vxpose.xlu0.b32.start [1/16] %v335, 128
    %401 = vxpose.xlu0.b32.cont [2/16] 0.0, 128
    %402 = vxpose.xlu0.b32.cont [3/16] 0.0, 128
    %403 = vxpose.xlu0.b32.cont [4/16] 0.0, 128
    %404 = vxpose.xlu0.b32.cont [5/16] 0.0, 128
    %405 = vxpose.xlu0.b32.cont [6/16] 0.0, 128
    %406 = vxpose.xlu0.b32.cont [7/16] 0.0, 128
    %407 = vxpose.xlu0.b32.cont [8/16] 0.0, 128
    %408 = vxpose.xlu0.b32.cont [9/16] 0.0, 128
    %409 = vxpose.xlu0.b32.cont [10/16] 0.0, 128
    %410 = vxpose.xlu0.b32.cont [11/16] 0.0, 128
    %411 = vxpose.xlu0.b32.cont [12/16] 0.0, 128
    %412 = vxpose.xlu0.b32.cont [13/16] 0.0, 128
    %413 = vxpose.xlu0.b32.cont [14/16] 0.0, 128
    %414 = vxpose.xlu0.b32.cont [15/16] 0.0, 128
    %415 = vxpose.xlu0.b32.end [16/16] 0.0, 128
    %v416 = vpop.trf.xlu0
    %v417 = vpop.trf.xlu0
    %v418 = vpop.trf.xlu0
    %v419 = vpop.trf.xlu0
    %v420 = vpop.trf.xlu0
    %v421 = vpop.trf.xlu0
    %v422 = vpop.trf.xlu0
    %v423 = vpop.trf.xlu0
    %v424 = vpop.trf.xlu0
    %v425 = vpop.trf.xlu0
    %v426 = vpop.trf.xlu0
    %v427 = vpop.trf.xlu0
    %v428 = vpop.trf.xlu0
    %v429 = vpop.trf.xlu0
    %v430 = vpop.trf.xlu0
    %v431 = vpop.trf.xlu0
    %432 = vst [vmem:[%s2] sm:$0xff] %v352
    %433 = vst [vmem:[%s2 + $0x8] sm:$0xff] %v384
    %vm434 = vcmask 7168
    %435 = vst.msk [vmem:[%s2 + $0x10] sm:$0xff] %vm434, %v416
    %436 = vst [vmem:[%s2 + $0x18] sm:$0xff] %v353
    %437 = vst [vmem:[%s2 + $0x20] sm:$0xff] %v385
    %438 = vst.msk [vmem:[%s2 + $0x28] sm:$0xff] %vm434, %v417
    %439 = vst [vmem:[%s2 + $0x30] sm:$0xff] %v354
    %440 = vst [vmem:[%s2 + $0x38] sm:$0xff] %v386
    %441 = vst.msk [vmem:[%s2 + $0x40] sm:$0xff] %vm434, %v418
    %442 = vst [vmem:[%s2 + $0x48] sm:$0xff] %v355
    %443 = vst [vmem:[%s2 + $0x50] sm:$0xff] %v387
    %444 = vst.msk [vmem:[%s2 + $0x58] sm:$0xff] %vm434, %v419
    %445 = vst [vmem:[%s2 + $0x60] sm:$0xff] %v356
    %446 = vst [vmem:[%s2 + $0x68] sm:$0xff] %v388
    %447 = vst.msk [vmem:[%s2 + $0x70] sm:$0xff] %vm434, %v420
    %448 = vst [vmem:[%s2 + $0x78] sm:$0xff] %v357
    %449 = vst [vmem:[%s2 + $0x80] sm:$0xff] %v389
    %450 = vst.msk [vmem:[%s2 + $0x88] sm:$0xff] %vm434, %v421
    %451 = vst [vmem:[%s2 + $0x90] sm:$0xff] %v358
    %452 = vst [vmem:[%s2 + $0x98] sm:$0xff] %v390
    %453 = vst.msk [vmem:[%s2 + $0xa0] sm:$0xff] %vm434, %v422
    %454 = vst [vmem:[%s2 + $0xa8] sm:$0xff] %v359
    %455 = vst [vmem:[%s2 + $0xb0] sm:$0xff] %v391
    %456 = vst.msk [vmem:[%s2 + $0xb8] sm:$0xff] %vm434, %v423
    %457 = vst [vmem:[%s2 + $0xc0] sm:$0xff] %v360
    %458 = vst [vmem:[%s2 + $0xc8] sm:$0xff] %v392
    %459 = vst.msk [vmem:[%s2 + $0xd0] sm:$0xff] %vm434, %v424
    %460 = vst [vmem:[%s2 + $0xd8] sm:$0xff] %v361
    %461 = vst [vmem:[%s2 + $0xe0] sm:$0xff] %v393
    %462 = vst.msk [vmem:[%s2 + $0xe8] sm:$0xff] %vm434, %v425
    %463 = vst [vmem:[%s2 + $0xf0] sm:$0xff] %v362
    %464 = vst [vmem:[%s2 + $0xf8] sm:$0xff] %v394
    %465 = vst.msk [vmem:[%s2 + $0x100] sm:$0xff] %vm434, %v426
    %466 = vst [vmem:[%s2 + $0x108] sm:$0xff] %v363
    %467 = vst [vmem:[%s2 + $0x110] sm:$0xff] %v395
    %468 = vst.msk [vmem:[%s2 + $0x118] sm:$0xff] %vm434, %v427
    // Predicated region
    $region18: #{tpu_custom_call.1} parent=1 // pred_check
      _
    $region19: #{tpu_custom_call.1} parent=1 // pred_check_branch
      %470 = sbr.rel (0) target = $region21
    $region20: #{tpu_custom_call.1} parent=1 // pred_region
      _
    $region21: #{tpu_custom_call.1} parent=1 // pred_fallthru
      _
    // Predicated region
    $region22: #{tpu_custom_call.1} parent=1 // pred_check
      _
    $region23: #{tpu_custom_call.1} parent=1 // pred_check_branch
      %472 = sbr.rel (0) target = $region25
    $region24: #{tpu_custom_call.1} parent=1 // pred_region
      _
    $region25: #{tpu_custom_call.1} parent=1 // pred_fallthru
      _
    %473 = vsyncpa [#allocation3], 1
    %474 = vsyncpa [#allocation5], 1

</llo_original>
